<compile_context>
chip_gen: v7x
topology: tpu7x:2x2x1
jax: 0.10.0
libtpu: 0.0.40
codegen_flags: <defaults>
</compile_context>

<pallas_src>
import jax
import jax.numpy as jnp
import numpy as np
from jax.experimental import pallas as pl
from jax.experimental.pallas import tpu as pltpu


def _make_kernel(H, W, Cin, Cout, hidden, use_res):
    S = H * W

    def sroll(a, off):
        # tap[i] = a[i + off] on the flat spatial axis (wrap handled by border masks)
        return a if off == 0 else pltpu.roll(a, shift=(-off) % S, axis=1)

    def kernel(x_ref, ph_ref, pp_ref, m_ref, o_ref):
        x = x_ref[0]                                   # (Cin, S), spatial on lanes
        ph = ph_ref[...]                               # (hidden, Cin+9+2) packed
        pp = pp_ref[...]                               # (Cout, hidden+1)  packed
        masks = m_ref[...]                             # (4, S) precomputed border masks

        w_exp = ph[:, 0:Cin]                           # (hidden, Cin)
        w_dw = ph[:, Cin:Cin + 9]                      # (hidden, 9)
        b_exp = ph[:, Cin + 9:Cin + 10]                # (hidden, 1)
        b_dw = ph[:, Cin + 10:Cin + 11]                # (hidden, 1)
        w_proj = pp[:, 0:hidden]                       # (Cout, hidden)
        b_proj = pp[:, hidden:hidden + 1]              # (Cout, 1)

        hm = {-1: masks[0:1, :], +1: masks[1:2, :]}    # column-valid masks
        vm = {-1: masks[2:3, :], +1: masks[3:4, :]}    # row-valid masks

        # ---- 1x1 expand conv (BN folded) + bias + ReLU6 : MXU ----
        h = jnp.dot(w_exp, x, preferred_element_type=jnp.float32)
        h = jnp.clip(h + b_exp, 0.0, 6.0)              # (hidden, S)

        # ---- 3x3 depthwise conv, stride 1, pad 1 (BN folded) ----
        # Horizontal pre-shifted, column-masked bases (2 rolls + 2 mask muls).
        hs = {0: h,
              -1: sroll(h, -1) * hm[-1],
              +1: sroll(h, +1) * hm[+1]}
        # Running accumulation per row offset; vmask applied once per row-sum.
        acc = None
        for dh_i, dh in enumerate((-1, 0, 1)):
            row = None
            for dc_i, dc in enumerate((-1, 0, 1)):
                k = dh_i * 3 + dc_i
                term = w_dw[:, k:k + 1] * sroll(hs[dc], dh * W)
                row = term if row is None else row + term
            if dh != 0:
                row = row * vm[dh]
            acc = row if acc is None else acc + row
        d = jnp.clip(acc + b_dw, 0.0, 6.0)             # (hidden, S)

        # ---- 1x1 project conv (BN folded) + bias (linear) : MXU ----
        o = jnp.dot(w_proj, d, preferred_element_type=jnp.float32) + b_proj

        if use_res:
            o = o + x                                  # residual (stride==1, inp==oup)
        o_ref[0] = o.astype(o_ref.dtype)               # lane-dense (S-wide) store

    return kernel


def _make_border_masks(H, W):
    S = H * W
    idx = jnp.arange(S, dtype=jnp.int32)
    col = idx % W
    row = idx // W
    return jnp.stack([
        col > 0,            # dc = -1 valid
        col < W - 1,        # dc = +1 valid
        row > 0,            # dh = -1 valid
        row < H - 1,        # dh = +1 valid
    ]).astype(jnp.float32)  # (4, S)


def inverted_residual_pallas(x_nchw, packed_h, packed_p, *, stride=1):
    # TODO(synk): stride=2 depthwise subsampling not implemented in-kernel (demo uses stride=1).
    assert stride == 1
    N, Cin, H, W = x_nchw.shape
    hidden = packed_h.shape[0]
    Cout = packed_p.shape[0]
    S = H * W
    use_res = (stride == 1) and (Cin == Cout)

    x = x_nchw.reshape(N, Cin, S)                      # channel-first, spatial on lanes
    masks = _make_border_masks(H, W)

    kernel = _make_kernel(H, W, Cin, Cout, hidden, use_res)
    out = pl.pallas_call(
        kernel,
        out_shape=jax.ShapeDtypeStruct((N, Cout, S), jnp.float32),
        grid_spec=pltpu.PrefetchScalarGridSpec(
            num_scalar_prefetch=0,
            grid=(N,),
            in_specs=[
                pl.BlockSpec((1, Cin, S), lambda n: (n, 0, 0)),
                pl.BlockSpec((hidden, Cin + 9 + 2), lambda n: (0, 0)),
                pl.BlockSpec((Cout, hidden + 1), lambda n: (0, 0)),
                pl.BlockSpec((4, S), lambda n: (0, 0)),
            ],
            out_specs=pl.BlockSpec((1, Cout, S), lambda n: (n, 0, 0)),
        ),
        compiler_params=pltpu.CompilerParams(dimension_semantics=("parallel",)),
    )(x, packed_h, packed_p, masks)
    return out.reshape(N, Cout, H, W)


def _fold_bn(gamma, beta, mean, var, eps=1e-5):
    scale = gamma / jnp.sqrt(var + eps)
    bias = beta - mean * scale
    return scale, bias


def prepare_params(raw, eps=1e-5):
    """Fold eval-mode BatchNorm into conv weights / per-channel biases and pack the six
    operands into two arrays for the channel-first kernel."""
    s_e, bi_e = _fold_bn(*raw['bn_exp'], eps=eps)
    s_d, bi_d = _fold_bn(*raw['bn_dw'], eps=eps)
    s_p, bi_p = _fold_bn(*raw['bn_proj'], eps=eps)
    w_exp = raw['w_exp'] * s_e[:, None]                          # (hidden, Cin)
    w_dw = (raw['w_dw'] * s_d[:, None, None]).reshape(-1, 9)     # (hidden, 9)
    w_proj = raw['w_proj'] * s_p[:, None]                        # (Cout, hidden)
    packed_h = jnp.concatenate([w_exp, w_dw, bi_e[:, None], bi_d[:, None]], axis=1)
    packed_p = jnp.concatenate([w_proj, bi_p[:, None]], axis=1)
    return packed_h, packed_p


def ref_forward(x, raw, eps=1e-5):
    """Pure-JAX NCHW reference (unfused BN, eval semantics) for validation only."""
    def bn(y, p):
        g, b, m, v = p
        inv = g / jnp.sqrt(v + eps)
        return y * inv[None, :, None, None] + (b - m * inv)[None, :, None, None]

    H, W = x.shape[2], x.shape[3]
    h = jnp.einsum('nchw,dc->ndhw', x, raw['w_exp'])
    h = jnp.clip(bn(h, raw['bn_exp']), 0.0, 6.0)
    hp = jnp.pad(h, ((0, 0), (0, 0), (1, 1), (1, 1)))
    acc = jnp.zeros_like(h)
    for kh in range(3):
        for kw in range(3):
            acc = acc + hp[:, :, kh:kh + H, kw:kw + W] * raw['w_dw'][None, :, kh, kw, None, None]
    d = jnp.clip(bn(acc, raw['bn_dw']), 0.0, 6.0)
    o = jnp.einsum('ndhw,od->nohw', d, raw['w_proj'])
    o = bn(o, raw['bn_proj'])
    return x + o                                       # stride==1 and inp==oup -> residual


if __name__ == "__main__":
    # Module hyperparameters: InvertedResidual(inp=4, oup=4, stride=1, expand_ratio=4)
    inp, oup, stride, expand_ratio = 4, 4, 1, 4
    hidden = int(round(inp * expand_ratio))            # 16
    N, H, W = 2, 16, 16

    key = jax.random.PRNGKey(0)
    ks = jax.random.split(key, 7)

    def bn_raw(k, c):
        k1, k2, k3, k4 = jax.random.split(k, 4)
        gamma = 1.0 + 0.1 * jax.random.normal(k1, (c,), jnp.float32)
        beta = 0.1 * jax.random.normal(k2, (c,), jnp.float32)
        mean = 0.1 * jax.random.normal(k3, (c,), jnp.float32)
        var = 1.0 + 0.1 * jax.random.uniform(k4, (c,), jnp.float32)
        return (gamma, beta, mean, var)

    raw = {
        'w_exp': 0.1 * jax.random.normal(ks[0], (hidden, inp), jnp.float32),    # 1x1 expand (O, I)
        'bn_exp': bn_raw(ks[3], hidden),
        'w_dw': 0.1 * jax.random.normal(ks[1], (hidden, 3, 3), jnp.float32),    # 3x3 depthwise
        'bn_dw': bn_raw(ks[4], hidden),
        'w_proj': 0.1 * jax.random.normal(ks[2], (oup, hidden), jnp.float32),   # 1x1 project (O, I)
        'bn_proj': bn_raw(ks[5], oup),
    }
    packed_h, packed_p = prepare_params(raw)

    # Input in PyTorch NCHW convention.
    x_nchw = jax.random.normal(ks[6], (N, inp, H, W), jnp.float32)

    out = inverted_residual_pallas(x_nchw, packed_h, packed_p, stride=stride)
    jax.block_until_ready(out)

    ref = ref_forward(x_nchw, raw)
    # Tolerance loosened vs. the pure-VPU version since the 1x1 convs now run on the MXU.
    np.testing.assert_allclose(np.asarray(out), np.asarray(ref), rtol=1e-2, atol=1e-2)
    print("KERNEL_OK")
</pallas_src>

<mosaic_0001>
module attributes {stable_mosaic.version = 11 : i64} {
  func.func @kernel(%arg0: i32, %arg1: memref<1x4x256xf32, #tpu.memory_space<vmem>>, %arg2: memref<16x15xf32, #tpu.memory_space<vmem>>, %arg3: memref<4x17xf32, #tpu.memory_space<vmem>>, %arg4: memref<4x256xf32, #tpu.memory_space<vmem>>, %arg5: memref<1x4x256xf32, #tpu.memory_space<vmem>>) attributes {dimension_semantics = [#tpu.dimension_semantics<parallel>], iteration_bounds = array<i64: 2>, scalar_prefetch = 0 : i64, scratch_operands = 0 : i64, tpu.core_type = #tpu.core_type<tc>, window_params = [{transform_indices = @transform_0, window_bounds = array<i64: 1, 4, 256>}, {pipeline_mode = #tpu.pipeline_mode<synchronous>, transform_indices = @transform_1, window_bounds = array<i64: 16, 15>}, {pipeline_mode = #tpu.pipeline_mode<synchronous>, transform_indices = @transform_2, window_bounds = array<i64: 4, 17>}, {pipeline_mode = #tpu.pipeline_mode<synchronous>, transform_indices = @transform_3, window_bounds = array<i64: 4, 256>}, {transform_indices = @transform_4, window_bounds = array<i64: 1, 4, 256>}]} {
    %c0 = arith.constant 0 : index
    %c0_0 = arith.constant 0 : index
    %c0_1 = arith.constant 0 : index
    %0 = vector.load %arg1[%c0, %c0_0, %c0_1] : memref<1x4x256xf32, #tpu.memory_space<vmem>>, vector<1x4x256xf32>
    %1 = vector.shape_cast %0 : vector<1x4x256xf32> to vector<4x256xf32>
    %c0_2 = arith.constant 0 : index
    %c0_3 = arith.constant 0 : index
    %2 = vector.load %arg2[%c0_2, %c0_3] : memref<16x15xf32, #tpu.memory_space<vmem>>, vector<16x15xf32>
    %c0_4 = arith.constant 0 : index
    %c0_5 = arith.constant 0 : index
    %3 = vector.load %arg3[%c0_4, %c0_5] : memref<4x17xf32, #tpu.memory_space<vmem>>, vector<4x17xf32>
    %c0_6 = arith.constant 0 : index
    %c0_7 = arith.constant 0 : index
    %4 = vector.load %arg4[%c0_6, %c0_7] : memref<4x256xf32, #tpu.memory_space<vmem>>, vector<4x256xf32>
    %5 = vector.extract_strided_slice %2 {offsets = [0, 0], sizes = [16, 4], strides = [1, 1]} : vector<16x15xf32> to vector<16x4xf32>
    %6 = vector.extract_strided_slice %2 {offsets = [0, 4], sizes = [16, 9], strides = [1, 1]} : vector<16x15xf32> to vector<16x9xf32>
    %7 = vector.extract_strided_slice %2 {offsets = [0, 13], sizes = [16, 1], strides = [1, 1]} : vector<16x15xf32> to vector<16x1xf32>
    %8 = vector.extract_strided_slice %2 {offsets = [0, 14], sizes = [16, 1], strides = [1, 1]} : vector<16x15xf32> to vector<16x1xf32>
    %9 = vector.extract_strided_slice %3 {offsets = [0, 0], sizes = [4, 16], strides = [1, 1]} : vector<4x17xf32> to vector<4x16xf32>
    %10 = vector.extract_strided_slice %3 {offsets = [0, 16], sizes = [4, 1], strides = [1, 1]} : vector<4x17xf32> to vector<4x1xf32>
    %11 = vector.extract_strided_slice %4 {offsets = [0, 0], sizes = [1, 256], strides = [1, 1]} : vector<4x256xf32> to vector<1x256xf32>
    %12 = vector.extract_strided_slice %4 {offsets = [1, 0], sizes = [1, 256], strides = [1, 1]} : vector<4x256xf32> to vector<1x256xf32>
    %13 = vector.extract_strided_slice %4 {offsets = [2, 0], sizes = [1, 256], strides = [1, 1]} : vector<4x256xf32> to vector<1x256xf32>
    %14 = vector.extract_strided_slice %4 {offsets = [3, 0], sizes = [1, 256], strides = [1, 1]} : vector<4x256xf32> to vector<1x256xf32>
    %cst = arith.constant dense<0.000000e+00> : vector<16x256xf32>
    %15 = tpu.matmul %5, %1, %cst {dimension_numbers = #tpu.dot_dimension_numbers<[1], [0], [0], [1], [0, 0, 1, 1], [], []>} : vector<16x4xf32>, vector<4x256xf32>, vector<16x256xf32> -> vector<16x256xf32>
    %16 = vector.broadcast %7 : vector<16x1xf32> to vector<16x256xf32>
    %17 = arith.addf %15, %16 : vector<16x256xf32>
    %cst_8 = arith.constant 0.000000e+00 : f32
    %cst_9 = arith.constant 6.000000e+00 : f32
    %18 = vector.broadcast %cst_8 : f32 to vector<16x256xf32>
    %19 = arith.maximumf %18, %17 : vector<16x256xf32>
    %20 = vector.broadcast %cst_9 : f32 to vector<16x256xf32>
    %21 = arith.minimumf %20, %19 : vector<16x256xf32>
    %c1_i32 = arith.constant 1 : i32
    %22 = tpu.dynamic_rotate %21 by %c1_i32 dim 1 : vector<16x256xf32>, i32 -> vector<16x256xf32>
    %23 = vector.broadcast %11 : vector<1x256xf32> to vector<16x256xf32>
    %24 = arith.mulf %22, %23 : vector<16x256xf32>
    %c255_i32 = arith.constant 255 : i32
    %25 = tpu.dynamic_rotate %21 by %c255_i32 dim 1 : vector<16x256xf32>, i32 -> vector<16x256xf32>
    %26 = vector.broadcast %12 : vector<1x256xf32> to vector<16x256xf32>
    %27 = arith.mulf %25, %26 : vector<16x256xf32>
    %28 = vector.extract_strided_slice %6 {offsets = [0, 0], sizes = [16, 1], strides = [1, 1]} : vector<16x9xf32> to vector<16x1xf32>
    %c16_i32 = arith.constant 16 : i32
    %29 = tpu.dynamic_rotate %24 by %c16_i32 dim 1 : vector<16x256xf32>, i32 -> vector<16x256xf32>
    %30 = vector.broadcast %28 : vector<16x1xf32> to vector<16x256xf32>
    %31 = arith.mulf %30, %29 : vector<16x256xf32>
    %32 = vector.extract_strided_slice %6 {offsets = [0, 1], sizes = [16, 1], strides = [1, 1]} : vector<16x9xf32> to vector<16x1xf32>
    %c16_i32_10 = arith.constant 16 : i32
    %33 = tpu.dynamic_rotate %21 by %c16_i32_10 dim 1 : vector<16x256xf32>, i32 -> vector<16x256xf32>
    %34 = vector.broadcast %32 : vector<16x1xf32> to vector<16x256xf32>
    %35 = arith.mulf %34, %33 : vector<16x256xf32>
    %36 = arith.addf %31, %35 : vector<16x256xf32>
    %37 = vector.extract_strided_slice %6 {offsets = [0, 2], sizes = [16, 1], strides = [1, 1]} : vector<16x9xf32> to vector<16x1xf32>
    %c16_i32_11 = arith.constant 16 : i32
    %38 = tpu.dynamic_rotate %27 by %c16_i32_11 dim 1 : vector<16x256xf32>, i32 -> vector<16x256xf32>
    %39 = vector.broadcast %37 : vector<16x1xf32> to vector<16x256xf32>
    %40 = arith.mulf %39, %38 : vector<16x256xf32>
    %41 = arith.addf %36, %40 : vector<16x256xf32>
    %42 = vector.broadcast %13 : vector<1x256xf32> to vector<16x256xf32>
    %43 = arith.mulf %41, %42 : vector<16x256xf32>
    %44 = vector.extract_strided_slice %6 {offsets = [0, 3], sizes = [16, 1], strides = [1, 1]} : vector<16x9xf32> to vector<16x1xf32>
    %45 = vector.broadcast %44 : vector<16x1xf32> to vector<16x256xf32>
    %46 = arith.mulf %45, %24 : vector<16x256xf32>
    %47 = vector.extract_strided_slice %6 {offsets = [0, 4], sizes = [16, 1], strides = [1, 1]} : vector<16x9xf32> to vector<16x1xf32>
    %48 = vector.broadcast %47 : vector<16x1xf32> to vector<16x256xf32>
    %49 = arith.mulf %48, %21 : vector<16x256xf32>
    %50 = arith.addf %46, %49 : vector<16x256xf32>
    %51 = vector.extract_strided_slice %6 {offsets = [0, 5], sizes = [16, 1], strides = [1, 1]} : vector<16x9xf32> to vector<16x1xf32>
    %52 = vector.broadcast %51 : vector<16x1xf32> to vector<16x256xf32>
    %53 = arith.mulf %52, %27 : vector<16x256xf32>
    %54 = arith.addf %50, %53 : vector<16x256xf32>
    %55 = arith.addf %43, %54 : vector<16x256xf32>
    %56 = vector.extract_strided_slice %6 {offsets = [0, 6], sizes = [16, 1], strides = [1, 1]} : vector<16x9xf32> to vector<16x1xf32>
    %c240_i32 = arith.constant 240 : i32
    %57 = tpu.dynamic_rotate %24 by %c240_i32 dim 1 : vector<16x256xf32>, i32 -> vector<16x256xf32>
    %58 = vector.broadcast %56 : vector<16x1xf32> to vector<16x256xf32>
    %59 = arith.mulf %58, %57 : vector<16x256xf32>
    %60 = vector.extract_strided_slice %6 {offsets = [0, 7], sizes = [16, 1], strides = [1, 1]} : vector<16x9xf32> to vector<16x1xf32>
    %c240_i32_12 = arith.constant 240 : i32
    %61 = tpu.dynamic_rotate %21 by %c240_i32_12 dim 1 : vector<16x256xf32>, i32 -> vector<16x256xf32>
    %62 = vector.broadcast %60 : vector<16x1xf32> to vector<16x256xf32>
    %63 = arith.mulf %62, %61 : vector<16x256xf32>
    %64 = arith.addf %59, %63 : vector<16x256xf32>
    %65 = vector.extract_strided_slice %6 {offsets = [0, 8], sizes = [16, 1], strides = [1, 1]} : vector<16x9xf32> to vector<16x1xf32>
    %c240_i32_13 = arith.constant 240 : i32
    %66 = tpu.dynamic_rotate %27 by %c240_i32_13 dim 1 : vector<16x256xf32>, i32 -> vector<16x256xf32>
    %67 = vector.broadcast %65 : vector<16x1xf32> to vector<16x256xf32>
    %68 = arith.mulf %67, %66 : vector<16x256xf32>
    %69 = arith.addf %64, %68 : vector<16x256xf32>
    %70 = vector.broadcast %14 : vector<1x256xf32> to vector<16x256xf32>
    %71 = arith.mulf %69, %70 : vector<16x256xf32>
    %72 = arith.addf %55, %71 : vector<16x256xf32>
    %73 = vector.broadcast %8 : vector<16x1xf32> to vector<16x256xf32>
    %74 = arith.addf %72, %73 : vector<16x256xf32>
    %cst_14 = arith.constant 0.000000e+00 : f32
    %cst_15 = arith.constant 6.000000e+00 : f32
    %75 = vector.broadcast %cst_14 : f32 to vector<16x256xf32>
    %76 = arith.maximumf %75, %74 : vector<16x256xf32>
    %77 = vector.broadcast %cst_15 : f32 to vector<16x256xf32>
    %78 = arith.minimumf %77, %76 : vector<16x256xf32>
    %cst_16 = arith.constant dense<0.000000e+00> : vector<4x256xf32>
    %79 = tpu.matmul %9, %78, %cst_16 {dimension_numbers = #tpu.dot_dimension_numbers<[1], [0], [0], [1], [0, 0, 1, 1], [], []>} : vector<4x16xf32>, vector<16x256xf32>, vector<4x256xf32> -> vector<4x256xf32>
    %80 = vector.broadcast %10 : vector<4x1xf32> to vector<4x256xf32>
    %81 = arith.addf %79, %80 : vector<4x256xf32>
    %82 = arith.addf %81, %1 : vector<4x256xf32>
    %c0_17 = arith.constant 0 : index
    %c0_18 = arith.constant 0 : index
    %c0_19 = arith.constant 0 : index
    %83 = vector.load %arg5[%c0_17, %c0_18, %c0_19] : memref<1x4x256xf32, #tpu.memory_space<vmem>>, vector<1x4x256xf32>
    %84 = vector.shape_cast %83 : vector<1x4x256xf32> to vector<4x256xf32>
    %85 = vector.shape_cast %82 : vector<4x256xf32> to vector<1x4x256xf32>
    tpu.vector_store %arg5[%c0_17, %c0_18, %c0_19], %85 {strides = array<i32>} : memref<1x4x256xf32, #tpu.memory_space<vmem>>, vector<1x4x256xf32>,
    return
  }
  func.func @transform_0(%arg0: i32) -> (i32, i32, i32) {
    %c0_i32 = arith.constant 0 : i32
    %c0_i32_0 = arith.constant 0 : i32
    %c0_i32_1 = arith.constant 0 : i32
    return %arg0, %c0_i32, %c0_i32_0 : i32, i32, i32
  }
  func.func @transform_1(%arg0: i32) -> (i32, i32) {
    %c0_i32 = arith.constant 0 : i32
    %c0_i32_0 = arith.constant 0 : i32
    %c0_i32_1 = arith.constant 0 : i32
    return %c0_i32, %c0_i32_0 : i32, i32
  }
  func.func @transform_2(%arg0: i32) -> (i32, i32) {
    %c0_i32 = arith.constant 0 : i32
    %c0_i32_0 = arith.constant 0 : i32
    %c0_i32_1 = arith.constant 0 : i32
    return %c0_i32, %c0_i32_0 : i32, i32
  }
  func.func @transform_3(%arg0: i32) -> (i32, i32) {
    %c0_i32 = arith.constant 0 : i32
    %c0_i32_0 = arith.constant 0 : i32
    %c0_i32_1 = arith.constant 0 : i32
    return %c0_i32, %c0_i32_0 : i32, i32
  }
  func.func @transform_4(%arg0: i32) -> (i32, i32, i32) {
    %c0_i32 = arith.constant 0 : i32
    %c0_i32_0 = arith.constant 0 : i32
    %c0_i32_1 = arith.constant 0 : i32
    return %arg0, %c0_i32, %c0_i32_0 : i32, i32, i32
  }
}

</mosaic_0001>

<llo_original>
// kernel: tpu_custom_call.1
$region0: #{tpu_custom_call.1}
  #allocation0 [shape = 'u32[]', space=smem, size = 0x4, offset = 0x4, fixed_abs, tag = 'smem constant byte address 0x4 - core index']
  #allocation1 [shape = 'u32[144,128]{1,0:T(1,128)}', space=vmem, size = 0x12000, scoped, tag = 'internal scratch']
  %s0 = inlined_call_operand.hbm [shape: f32[2,4,256], index: 0, kind: input, shape index: {}]
  %s1 = inlined_call_operand.hbm [shape: f32[16,15], index: 1, kind: input, shape index: {}]
  %s2 = inlined_call_operand.hbm [shape: f32[4,17], index: 2, kind: input, shape index: {}]
  %s3 = inlined_call_operand.vmem [shape: f32[4,256], index: 3, kind: input, shape index: {}]
  %s4 = inlined_call_operand.hbm [shape: f32[2,4,256], index: 4, kind: output, shape index: {}]
  %s5 = sld [smem:[#allocation0]]
  $region61: #{tpu_custom_call.1} parent=0
    _
  %s7 = ssub.s32 1, %s5
  %s8 = scalar_select 0, %s7, %s5
  $region1: #{tpu_custom_call.1} parent=0
    #allocation2 [shape = 'u8[8192]{0}', space=vmem, size = 0x2000, scoped, tag = 'input window, operand 0']
    #allocation3 [shape = 's32[2]{0}', space=sflag, size = 0x8, scoped, tag = 'scoped memory for tpu_custom_call.1']
    #allocation4 [shape = 's32[2]{0}', space=sflag, size = 0x8, scoped, tag = 'scoped memory for tpu_custom_call.1']
    #allocation5 [shape = 'u8[8192]{0}', space=vmem, size = 0x2000, scoped, tag = 'input window, operand 1, single buffered']
    #allocation6 [shape = 's32[1]{0}', space=sflag, size = 0x4, scoped, tag = 'scoped memory for tpu_custom_call.1']
    #allocation7 [shape = 'u8[2048]{0}', space=vmem, size = 0x800, scoped, tag = 'input window, operand 2, single buffered']
    #allocation8 [shape = 'u8[8192]{0}', space=vmem, size = 0x2000, scoped, tag = 'output window, operand 0']
    %9 = vsyncpa [#allocation3], 0
    %s10 = scalar_lea.sflag [#allocation3], 1
    %11 = vsyncpa %s10, 0
    %12 = vsyncpa [#allocation6], 0
    %13 = vsyncpa [#allocation4], 0
    %s14 = scalar_lea.sflag [#allocation4], 1
    %15 = vsyncpa %s14, 0
    loop: start=0, step=1, limit=4
    $region2: #{tpu_custom_call.1} parent=1 // loop_pre_header
      _
    $region3: #{tpu_custom_call.1} parent=1 // loop_header
      %s17 = sphi 0, %s21
      %p18 = scmp.ge.s32.totalorder %s17, 4
      %s27 = sphi 0, %s29
      %s30 = sphi 0, %s27
      %s31 = sphi 0, %s30
      %s47 = sphi 0, %s31
      %s51 = sphi 0, %s51
      %s53 = sphi 0, %s51
      %s54 = sphi 0, %s53
      %s68 = sphi 0, %s54
      %s72 = sphi 0, %s72
      %s74 = sphi 0, %s72
      %s75 = sphi 0, %s74
      %s89 = sphi 0, %s75
      %s93 = sphi 0, %s93
      %s95 = sphi 0, %s93
      %s96 = sphi 0, %s95
      %s110 = sphi 0, %s96
      %s116 = sphi 0, %s118
      %s119 = sphi 0, %s116
      %s120 = sphi 0, %s119
      %s136 = sphi 0, %s120
    $region4: #{tpu_custom_call.1} parent=1 // loop_header_branch
      %20 = sbr.rel (%p18) target = $region8
    $region5: #{tpu_custom_call.1} parent=1 // loop_body
      %s22 = ssub.s32 %s17, 1
      %s23 = ssub.s32 %s17, 2
      %s24 = sadd.s32 %s17, 1
      %s25 = ssub.s32 %s17, %s24
      %p26 = scmp.eq.s32.totalorder %s25, 0
      %s28 = sadd.s32 %s27, 1
      %s29 = scalar_select %p26, %s27, %s28
      %p32 = pneg %p26
      %p33 = scmp.eq.s32.totalorder %s17, 1
      %p34 = por %p32, %p33
      %p35 = scmp.ne.s32.totalorder %s27, %s30
      %p36 = scmp.eq.s32.totalorder %s17, 0
      %p37 = por %p35, %p36
      %p38 = scmp.ne.s32.totalorder %s27, %s30
      %p39 = scmp.eq.s32.totalorder %s22, 1
      %p40 = por %p38, %p39
      %p41 = scmp.ne.s32.totalorder %s30, %s31
      %p42 = scmp.eq.s32.totalorder %s22, 0
      %p43 = por %p41, %p42
      %p44 = scmp.ne.s32.totalorder %s30, %s31
      %p45 = scmp.eq.s32.totalorder %s23, 1
      %p46 = por %p44, %p45
      %p48 = scmp.ne.s32.totalorder %s31, %s47
      %p49 = scmp.eq.s32.totalorder %s23, 0
      %p50 = por %p48, %p49
      %s52 = sadd.s32 %s51, 1
      %p55 = scmp.eq.s32.totalorder %s17, 1
      %p56 = scmp.ne.s32.totalorder %s51, %s53
      %p57 = scmp.eq.s32.totalorder %s17, 0
      %p58 = por %p56, %p57
      %p59 = scmp.ne.s32.totalorder %s51, %s53
      %p60 = scmp.eq.s32.totalorder %s22, 1
      %p61 = por %p59, %p60
      %p62 = scmp.ne.s32.totalorder %s53, %s54
      %p63 = scmp.eq.s32.totalorder %s22, 0
      %p64 = por %p62, %p63
      %p65 = scmp.ne.s32.totalorder %s53, %s54
      %p66 = scmp.eq.s32.totalorder %s23, 1
      %p67 = por %p65, %p66
      %p69 = scmp.ne.s32.totalorder %s54, %s68
      %p70 = scmp.eq.s32.totalorder %s23, 0
      %p71 = por %p69, %p70
      %s73 = sadd.s32 %s72, 1
      %p76 = scmp.eq.s32.totalorder %s17, 1
      %p77 = scmp.ne.s32.totalorder %s72, %s74
      %p78 = scmp.eq.s32.totalorder %s17, 0
      %p79 = por %p77, %p78
      %p80 = scmp.ne.s32.totalorder %s72, %s74
      %p81 = scmp.eq.s32.totalorder %s22, 1
      %p82 = por %p80, %p81
      %p83 = scmp.ne.s32.totalorder %s74, %s75
      %p84 = scmp.eq.s32.totalorder %s22, 0
      %p85 = por %p83, %p84
      %p86 = scmp.ne.s32.totalorder %s74, %s75
      %p87 = scmp.eq.s32.totalorder %s23, 1
      %p88 = por %p86, %p87
      %p90 = scmp.ne.s32.totalorder %s75, %s89
      %p91 = scmp.eq.s32.totalorder %s23, 0
      %p92 = por %p90, %p91
      %s94 = sadd.s32 %s93, 1
      %p97 = scmp.eq.s32.totalorder %s17, 1
      %p98 = scmp.ne.s32.totalorder %s93, %s95
      %p99 = scmp.eq.s32.totalorder %s17, 0
      %p100 = por %p98, %p99
      %p101 = scmp.ne.s32.totalorder %s93, %s95
      %p102 = scmp.eq.s32.totalorder %s22, 1
      %p103 = por %p101, %p102
      %p104 = scmp.ne.s32.totalorder %s95, %s96
      %p105 = scmp.eq.s32.totalorder %s22, 0
      %p106 = por %p104, %p105
      %p107 = scmp.ne.s32.totalorder %s95, %s96
      %p108 = scmp.eq.s32.totalorder %s23, 1
      %p109 = por %p107, %p108
      %p111 = scmp.ne.s32.totalorder %s96, %s110
      %p112 = scmp.eq.s32.totalorder %s23, 0
      %p113 = por %p111, %p112
      %s114 = ssub.s32 %s17, %s24
      %p115 = scmp.eq.s32.totalorder %s114, 0
      %s117 = sadd.s32 %s116, 1
      %s118 = scalar_select %p115, %s116, %s117
      %p121 = pneg %p115
      %p122 = scmp.eq.s32.totalorder %s17, 1
      %p123 = por %p121, %p122
      %p124 = scmp.ne.s32.totalorder %s116, %s119
      %p125 = scmp.eq.s32.totalorder %s17, 0
      %p126 = por %p124, %p125
      %p127 = scmp.ne.s32.totalorder %s116, %s119
      %p128 = scmp.eq.s32.totalorder %s22, 1
      %p129 = por %p127, %p128
      %p130 = scmp.ne.s32.totalorder %s119, %s120
      %p131 = scmp.eq.s32.totalorder %s22, 0
      %p132 = por %p130, %p131
      %p133 = scmp.ne.s32.totalorder %s119, %s120
      %p134 = scmp.eq.s32.totalorder %s23, 1
      %p135 = por %p133, %p134
      %p137 = scmp.ne.s32.totalorder %s120, %s136
      %p138 = scmp.eq.s32.totalorder %s23, 0
      %p139 = por %p137, %p138
      %p140 = scmp.le.s32.totalorder 1, %s17
      %p141 = scmp.lt.s32.totalorder %s17, 3
      %p142 = pnand %p140, %p141
      %p143 = pneg %p142
      // Predicated region
      $region9: #{tpu_custom_call.1} parent=5 // pred_check
        _
      $region10: #{tpu_custom_call.1} parent=5 // pred_check_branch
        %145 = sbr.rel (%p142) target = $region12
      $region11: #{tpu_custom_call.1} parent=5 // pred_region
        %s146 = ssub.s32 %s17, 1
        // Predicated region
        $region13: #{tpu_custom_call.1} parent=11 // pred_check
          %p147 = pneg %p64
        $region14: #{tpu_custom_call.1} parent=11 // pred_check_branch
          %149 = sbr.rel (%p147) target = $region16
        $region15: #{tpu_custom_call.1} parent=11 // pred_region
          %s151 = ssub.s32 256, 256
          %152 = vsyncadd [#allocation6], %s151
          %s153 = sshll.u32 [#allocation5], 4
          %s154 = int_to_ptr.vmem [resolvable:$true] %s153
          %159 = dma.hbm_to_vmem [thread:$0]  %s1, 256, %s154, [#allocation6], 128, 128, 8
        $region16: #{tpu_custom_call.1} parent=11 // pred_fallthru
          _
        // Predicated region
        $region17: #{tpu_custom_call.1} parent=11 // pred_check
          %p160 = pneg %p85
        $region18: #{tpu_custom_call.1} parent=11 // pred_check_branch
          %162 = sbr.rel (%p160) target = $region20
        $region19: #{tpu_custom_call.1} parent=11 // pred_region
          %s164 = ssub.s32 64, 64
          %165 = vsyncadd [#allocation6], %s164
          %s167 = sshll.u32 [#allocation7], 4
          %s168 = int_to_ptr.vmem [resolvable:$true] %s167
          %170 = dma.hbm_to_vmem [thread:$0]  %s2, 64, %s168, [#allocation6]
        $region20: #{tpu_custom_call.1} parent=11 // pred_fallthru
          _
        // Predicated region
        $region21: #{tpu_custom_call.1} parent=11 // pred_check
          %p171 = pneg %p106
        $region22: #{tpu_custom_call.1} parent=11 // pred_check_branch
          %173 = sbr.rel (%p171) target = $region24
        $region23: #{tpu_custom_call.1} parent=11 // pred_region
          _
        $region24: #{tpu_custom_call.1} parent=11 // pred_fallthru
          _
      $region12: #{tpu_custom_call.1} parent=5 // pred_fallthru
        _
      %p174 = scmp.lt.s32.totalorder %s17, 2
      // Predicated region
      $region25: #{tpu_custom_call.1} parent=5 // pred_check
        %p175 = pneg %p174
      $region26: #{tpu_custom_call.1} parent=5 // pred_check_branch
        %177 = sbr.rel (%p175) target = $region28
      $region27: #{tpu_custom_call.1} parent=5 // pred_region
        // Predicated region
        $region29: #{tpu_custom_call.1} parent=27 // pred_check
          %p178 = pneg %p37
        $region30: #{tpu_custom_call.1} parent=27 // pred_check_branch
          %180 = sbr.rel (%p178) target = $region32
        $region31: #{tpu_custom_call.1} parent=27 // pred_region
          %s181 = sand.u32 %s27, 1
          %s182 = scalar_lea.sflag [#allocation3], %s181
          %s183 = sand.u32 %s27, 1
          %s184 = smul.addr %s183, 8
          %s185 = scalar_lea.vmem [#allocation2], %s184
          %s187 = ssub.s32 128, 128
          %188 = vsyncadd %s182, %s187
          %s189 = smul.addr %s17, 2
          %s190 = smul.addr %s189, 64
          %s191 = scalar_lea.hbm %s0, %s190
          %s193 = sshll.u32 %s185, 4
          %s194 = int_to_ptr.vmem [resolvable:$true] %s193
          %196 = dma.hbm_to_vmem [thread:$0]  %s191, 128, %s194, %s182
        $region32: #{tpu_custom_call.1} parent=27 // pred_fallthru
          _
      $region28: #{tpu_custom_call.1} parent=5 // pred_fallthru
        _
      %p197 = scmp.le.s32.totalorder 1, %s17
      %p198 = scmp.lt.s32.totalorder %s17, 3
      %p199 = pnand %p197, %p198
      %p200 = pneg %p199
      // Predicated region
      $region33: #{tpu_custom_call.1} parent=5 // pred_check
        _
      $region34: #{tpu_custom_call.1} parent=5 // pred_check_branch
        %202 = sbr.rel (%p199) target = $region36
      $region35: #{tpu_custom_call.1} parent=5 // pred_region
        %s203 = ssub.s32 %s17, 1
        %s204 = sand.u32 %s30, 1
        %s205 = scalar_lea.sflag [#allocation3], %s204
        %s206 = sand.u32 %s30, 1
        %s207 = smul.addr %s206, 8
        %s208 = scalar_lea.vmem [#allocation2], %s207
        // Predicated region
        $region37: #{tpu_custom_call.1} parent=35 // pred_check
          %p209 = pneg %p43
        $region38: #{tpu_custom_call.1} parent=35 // pred_check_branch
          %211 = sbr.rel (%p209) target = $region40
        $region39: #{tpu_custom_call.1} parent=35 // pred_region
          %212 = dma.done %s205, 128
        $region40: #{tpu_custom_call.1} parent=35 // pred_fallthru
          _
        // Predicated region
        $region41: #{tpu_custom_call.1} parent=35 // pred_check
          %p213 = pneg %p64
        $region42: #{tpu_custom_call.1} parent=35 // pred_check_branch
          %215 = sbr.rel (%p213) target = $region44
        $region43: #{tpu_custom_call.1} parent=35 // pred_region
          %216 = dma.done [#allocation6], 256
        $region44: #{tpu_custom_call.1} parent=35 // pred_fallthru
          _
        // Predicated region
        $region45: #{tpu_custom_call.1} parent=35 // pred_check
          %p217 = pneg %p85
        $region46: #{tpu_custom_call.1} parent=35 // pred_check_branch
          %219 = sbr.rel (%p217) target = $region48
        $region47: #{tpu_custom_call.1} parent=35 // pred_region
          %220 = dma.done [#allocation6], 64
        $region48: #{tpu_custom_call.1} parent=35 // pred_fallthru
          _
        %s221 = sand.u32 %s30, 1
        %s222 = scalar_lea.sflag [#allocation3], %s221
        %s223 = sand.u32 %s30, 1
        %s224 = smul.addr %s223, 8
        %s225 = scalar_lea.vmem [#allocation2], %s224
        %p226 = pneg %p43
        %p227 = pneg %p40
        %p228 = pneg %p64
        %p229 = pneg %p61
        %p230 = pneg %p85
        %p231 = pneg %p82
        %p232 = pneg %p106
        %p233 = pneg %p103
        %p234 = pneg %p132
        %p235 = pneg %p129
        %s236 = sand.u32 %s119, 1
        %s237 = scalar_lea.sflag [#allocation4], %s236
        %s238 = sand.u32 %s119, 1
        %s239 = smul.addr %s238, 8
        %s240 = scalar_lea.vmem [#allocation8], %s239
        %v241 = vld [vmem:[%s208] sm:$0xff]
        %v242 = vld [vmem:[#allocation5] sm:$0xff]
        %v243 = vld [vmem:[#allocation5 + $0x8] sm:$0xff]
        %v244 = vld [vmem:[#allocation7] sm:$0xf]
        %v245 = vld [vmem:[%s3] sm:$0xff]
        %247 = vset.pattern.permute.xlu0 13
        %248 = vperm.xlu0 %247, %v242
        %v249 = vpop.permute.xlu0 %248
        %252 = vset.pattern.permute.xlu0 13
        %253 = vperm.xlu0 %252, %v243
        %v254 = vpop.permute.xlu0 %253
        %v257 = vcombine.high %v241, %v241
        %vm258 = vcmask 31744
        %v259 = vsel %vm258, %v242, 0
        %v261 = vsel %vm258, %v243, 0
        %vm263 = vcmask 1043456
        %v264 = vsel %vm263, %v241, 0
        %v266 = vsel %vm263, %v257, 0
        %268 = vmatprep.subr.mxu0 %v266
        %269 = vmatpush1.msra.mxu0 %v264
        %270 = vmatprep.subr.mxu0 0.0
        %271 = vmatpush1.msra.mxu0 0.0
        %272 = vmatprep.subr.mxu0 0.0
        %273 = vmatpush1.msra.mxu0 0.0
        %274 = vmatprep.subr.mxu0 0.0
        %275 = vmatpush1.msra.mxu0 0.0
        %276 = vmatprep.subr.mxu0 0.0
        %277 = vmatpush1.msra.mxu0 0.0
        %278 = vmatprep.subr.mxu0 0.0
        %279 = vmatpush1.msra.mxu0 0.0
        %280 = vmatprep.subr.mxu0 0.0
        %281 = vmatpush1.msra.mxu0 0.0
        %282 = vmatprep.subr.mxu0 0.0
        %283 = vmatpush1.msra.mxu0 0.0
        %284 = vmatprep.subr.mxu0 0.0
        %285 = vmatpush1.msra.mxu0 0.0
        %286 = vmatprep.subr.mxu0 0.0
        %287 = vmatpush1.msra.mxu0 0.0
        %288 = vmatprep.subr.mxu0 0.0
        %289 = vmatpush1.msra.mxu0 0.0
        %290 = vmatprep.subr.mxu0 0.0
        %291 = vmatpush1.msra.mxu0 0.0
        %292 = vmatprep.subr.mxu0 0.0
        %293 = vmatpush1.msra.mxu0 0.0
        %294 = vmatprep.subr.mxu0 0.0
        %295 = vmatpush1.msra.mxu0 0.0
        %296 = vmatprep.subr.mxu0 0.0
        %297 = vmatpush1.msra.mxu0 0.0
        %298 = vmatprep.subr.mxu0 0.0
        %299 = vmatpush1.msra.mxu0 0.0
        %300 = vmatprep.subr.mxu0 0.0
        %301 = vmatpush1.msra.mxu0 0.0
        %302 = vmatprep.subr.mxu0 0.0
        %303 = vmatpush1.msra.mxu0 0.0
        %304 = vmatprep.subr.mxu0 0.0
        %305 = vmatpush1.msra.mxu0 0.0
        %306 = vmatprep.subr.mxu0 0.0
        %307 = vmatpush1.msra.mxu0 0.0
        %308 = vmatprep.subr.mxu0 0.0
        %309 = vmatpush1.msra.mxu0 0.0
        %310 = vmatprep.subr.mxu0 0.0
        %311 = vmatpush1.msra.mxu0 0.0
        %312 = vmatprep.subr.mxu0 0.0
        %313 = vmatpush1.msra.mxu0 0.0
        %314 = vmatprep.subr.mxu0 0.0
        %315 = vmatpush1.msra.mxu0 0.0
        %316 = vmatprep.subr.mxu0 0.0
        %317 = vmatpush1.msra.mxu0 0.0
        %318 = vmatprep.subr.mxu0 0.0
        %319 = vmatpush1.msra.mxu0 0.0
        %320 = vmatprep.subr.mxu0 0.0
        %321 = vmatpush1.msra.mxu0 0.0
        %322 = vmatprep.subr.mxu0 0.0
        %323 = vmatpush1.msra.mxu0 0.0
        %324 = vmatprep.subr.mxu0 0.0
        %325 = vmatpush1.msra.mxu0 0.0
        %326 = vmatprep.subr.mxu0 0.0
        %327 = vmatpush1.msra.mxu0 0.0
        %328 = vmatprep.subr.mxu0 0.0
        %329 = vmatpush1.msra.mxu0 0.0
        %330 = vmatprep.subr.mxu0 0.0
        %331 = vmatpush1.msra.mxu0 0.0
        %332 = vmatprep.mubr.f32.mxu0 0.0
        %333 = vmatmul.mubr.f32.gmra.mrb[0].mxu0 %v259
        %v334 = vpop.f32.mrb[0].mxu0
        %v335 = vadd.f32 %v249, %v334
        %v336 = vpop.f32.mrb[0].mxu0
        %v337 = vadd.f32 %v249, %v336
        %338 = vmatprep.mubr.f32.mxu0 0.0
        %339 = vmatmul.mubr.f32.gmra.mrb[0].mxu0 %v261
        %v340 = vpop.f32.mrb[0].mxu0
        %v341 = vadd.f32 %v254, %v340
        %v342 = vpop.f32.mrb[0].mxu0
        %v343 = vadd.f32 %v254, %v342
        %344 = vdwg.mxu0
        %v345 = vmax.f32 %v335, 0.0
        %v346 = vmax.f32 %v337, 0.0
        %v347 = vmax.f32 %v341, 0.0
        %v348 = vmax.f32 %v343, 0.0
        %v349 = vmin.f32 %v345, 6.0
        %v350 = vmin.f32 %v346, 6.0
        %v351 = vmin.f32 %v347, 6.0
        %v352 = vmin.f32 %v348, 6.0
        %353 = vrot.lane.b32.xlu0 %v349, 1
        %v354 = vpop.permute.xlu0 %353
        %355 = vrot.lane.b32.xlu0 %v351, 1
        %v356 = vpop.permute.xlu0 %355
        %357 = vrot.lane.b32.xlu0 %v350, 1
        %v358 = vpop.permute.xlu0 %357
        %359 = vrot.lane.b32.xlu0 %v352, 1
        %v360 = vpop.permute.xlu0 %359
        %v361 = vlaneseq
        %v362 = vand.u32 %v361, 127
        %vm363 = vcmp.lt.s32.totalorder %v362, 1
        %v364 = vsel %vm363, %v354, %v358
        %v365 = vsel %vm363, %v356, %v360
        %v366 = vsel %vm363, %v358, %v354
        %v367 = vsel %vm363, %v360, %v356
        %v369 = vlaneseq
        %v370 = vshrl.u32 %v369, 7
        %v371 = vsub.s32 0, %v370
        %v372 = vrot.slane %v245, %v371
        %v373 = vlaneseq
        %v374 = vshrl.u32 %v373, 7
        %v375 = vsub.s32 4, %v374
        %v376 = vrot.slane %v245, %v375
        %v379 = vlaneseq
        %v380 = vshrl.u32 %v379, 7
        %v381 = vsub.s32 0, %v380
        %v382 = vrot.slane %v372, %v381
        %v383 = vlaneseq
        %v384 = vshrl.u32 %v383, 7
        %v385 = vsub.s32 0, %v384
        %v386 = vrot.slane %v376, %v385
        %v387 = vmul.f32 %v366, %v382
        %v388 = vmul.f32 %v364, %v386
        %v389 = vmul.f32 %v367, %v382
        %v390 = vmul.f32 %v365, %v386
        %391 = vrot.lane.b32.xlu0 %v349, 127
        %v392 = vpop.permute.xlu0 %391
        %393 = vrot.lane.b32.xlu0 %v351, 127
        %v394 = vpop.permute.xlu0 %393
        %395 = vrot.lane.b32.xlu0 %v350, 127
        %v396 = vpop.permute.xlu0 %395
        %397 = vrot.lane.b32.xlu0 %v352, 127
        %v398 = vpop.permute.xlu0 %397
        %vm399 = vcmp.lt.s32.totalorder %v362, 127
        %v400 = vsel %vm399, %v392, %v396
        %v401 = vsel %vm399, %v394, %v398
        %v402 = vsel %vm399, %v396, %v392
        %v403 = vsel %vm399, %v398, %v394
        %v404 = vlaneseq
        %v405 = vshrl.u32 %v404, 7
        %v406 = vsub.s32 1, %v405
        %v407 = vrot.slane %v245, %v406
        %v408 = vlaneseq
        %v409 = vshrl.u32 %v408, 7
        %v410 = vsub.s32 5, %v409
        %v411 = vrot.slane %v245, %v410
        %v414 = vlaneseq
        %v415 = vshrl.u32 %v414, 7
        %v416 = vsub.s32 1, %v415
        %v417 = vrot.slane %v407, %v416
        %v418 = vlaneseq
        %v419 = vshrl.u32 %v418, 7
        %v420 = vsub.s32 1, %v419
        %v421 = vrot.slane %v411, %v420
        %v422 = vmul.f32 %v400, %v417
        %v423 = vmul.f32 %v402, %v421
        %v424 = vmul.f32 %v401, %v417
        %v425 = vmul.f32 %v403, %v421
        %426 = vrot.lane.b32.xlu0 %v387, 16
        %v427 = vpop.permute.xlu0 %426
        %428 = vrot.lane.b32.xlu0 %v389, 16
        %v429 = vpop.permute.xlu0 %428
        %430 = vrot.lane.b32.xlu0 %v388, 16
        %v431 = vpop.permute.xlu0 %430
        %432 = vrot.lane.b32.xlu0 %v390, 16
        %v433 = vpop.permute.xlu0 %432
        %vm434 = vcmp.lt.s32.totalorder %v362, 16
        %v435 = vsel %vm434, %v427, %v431
        %v436 = vsel %vm434, %v429, %v433
        %v437 = vsel %vm434, %v431, %v427
        %v438 = vsel %vm434, %v433, %v429
        %439 = vset.pattern.permute.xlu0 4
        %440 = vperm.xlu0 %439, %v242
        %v441 = vpop.permute.xlu0 %440
        %443 = vset.pattern.permute.xlu0 4
        %444 = vperm.xlu0 %443, %v243
        %v445 = vpop.permute.xlu0 %444
        %v447 = vmul.f32 %v441, %v437
        %v448 = vmul.f32 %v441, %v435
        %v449 = vmul.f32 %v445, %v438
        %v450 = vmul.f32 %v445, %v436
        %451 = vrot.lane.b32.xlu0 %v349, 16
        %v452 = vpop.permute.xlu0 %451
        %453 = vrot.lane.b32.xlu0 %v351, 16
        %v454 = vpop.permute.xlu0 %453
        %455 = vrot.lane.b32.xlu0 %v350, 16
        %v456 = vpop.permute.xlu0 %455
        %457 = vrot.lane.b32.xlu0 %v352, 16
        %v458 = vpop.permute.xlu0 %457
        %v459 = vsel %vm434, %v452, %v456
        %v460 = vsel %vm434, %v454, %v458
        %v461 = vsel %vm434, %v456, %v452
        %v462 = vsel %vm434, %v458, %v454
        %463 = vset.pattern.permute.xlu0 5
        %464 = vperm.xlu0 %463, %v242
        %v465 = vpop.permute.xlu0 %464
        %467 = vset.pattern.permute.xlu0 5
        %468 = vperm.xlu0 %467, %v243
        %v469 = vpop.permute.xlu0 %468
        %v471 = vmul.f32 %v465, %v461
        %v472 = vmul.f32 %v465, %v459
        %v473 = vmul.f32 %v469, %v462
        %v474 = vmul.f32 %v469, %v460
        %v475 = vadd.f32 %v447, %v471
        %v476 = vadd.f32 %v448, %v472
        %v477 = vadd.f32 %v449, %v473
        %v478 = vadd.f32 %v450, %v474
        %479 = vrot.lane.b32.xlu0 %v422, 16
        %v480 = vpop.permute.xlu0 %479
        %481 = vrot.lane.b32.xlu0 %v424, 16
        %v482 = vpop.permute.xlu0 %481
        %483 = vrot.lane.b32.xlu0 %v423, 16
        %v484 = vpop.permute.xlu0 %483
        %485 = vrot.lane.b32.xlu0 %v425, 16
        %v486 = vpop.permute.xlu0 %485
        %v487 = vsel %vm434, %v480, %v484
        %v488 = vsel %vm434, %v482, %v486
        %v489 = vsel %vm434, %v484, %v480
        %v490 = vsel %vm434, %v486, %v482
        %491 = vset.pattern.permute.xlu0 6
        %492 = vperm.xlu0 %491, %v242
        %v493 = vpop.permute.xlu0 %492
        %495 = vset.pattern.permute.xlu0 6
        %496 = vperm.xlu0 %495, %v243
        %v497 = vpop.permute.xlu0 %496
        %v499 = vmul.f32 %v493, %v489
        %v500 = vmul.f32 %v493, %v487
        %v501 = vmul.f32 %v497, %v490
        %v502 = vmul.f32 %v497, %v488
        %v503 = vadd.f32 %v475, %v499
        %v504 = vadd.f32 %v476, %v500
        %v505 = vadd.f32 %v477, %v501
        %v506 = vadd.f32 %v478, %v502
        %v507 = vlaneseq
        %v508 = vshrl.u32 %v507, 7
        %v509 = vsub.s32 2, %v508
        %v510 = vrot.slane %v245, %v509
        %v511 = vlaneseq
        %v512 = vshrl.u32 %v511, 7
        %v513 = vsub.s32 6, %v512
        %v514 = vrot.slane %v245, %v513
        %v517 = vlaneseq
        %v518 = vshrl.u32 %v517, 7
        %v519 = vsub.s32 2, %v518
        %v520 = vrot.slane %v510, %v519
        %v521 = vlaneseq
        %v522 = vshrl.u32 %v521, 7
        %v523 = vsub.s32 2, %v522
        %v524 = vrot.slane %v514, %v523
        %v525 = vmul.f32 %v503, %v520
        %v526 = vmul.f32 %v504, %v524
        %v527 = vmul.f32 %v505, %v520
        %v528 = vmul.f32 %v506, %v524
        %529 = vset.pattern.permute.xlu0 7
        %530 = vperm.xlu0 %529, %v242
        %v531 = vpop.permute.xlu0 %530
        %533 = vset.pattern.permute.xlu0 7
        %534 = vperm.xlu0 %533, %v243
        %v535 = vpop.permute.xlu0 %534
        %v537 = vmul.f32 %v531, %v387
        %v538 = vmul.f32 %v531, %v388
        %v539 = vmul.f32 %v535, %v389
        %v540 = vmul.f32 %v535, %v390
        %541 = vset.pattern.permute.xlu0 8
        %542 = vperm.xlu0 %541, %v242
        %v543 = vpop.permute.xlu0 %542
        %545 = vset.pattern.permute.xlu0 8
        %546 = vperm.xlu0 %545, %v243
        %v547 = vpop.permute.xlu0 %546
        %v549 = vmul.f32 %v543, %v349
        %v550 = vmul.f32 %v543, %v350
        %v551 = vmul.f32 %v547, %v351
        %v552 = vmul.f32 %v547, %v352
        %v553 = vadd.f32 %v537, %v549
        %v554 = vadd.f32 %v538, %v550
        %v555 = vadd.f32 %v539, %v551
        %v556 = vadd.f32 %v540, %v552
        %557 = vset.pattern.permute.xlu0 9
        %558 = vperm.xlu0 %557, %v242
        %v559 = vpop.permute.xlu0 %558
        %561 = vset.pattern.permute.xlu0 9
        %562 = vperm.xlu0 %561, %v243
        %v563 = vpop.permute.xlu0 %562
        %v565 = vmul.f32 %v559, %v422
        %v566 = vmul.f32 %v559, %v423
        %v567 = vmul.f32 %v563, %v424
        %v568 = vmul.f32 %v563, %v425
        %v569 = vadd.f32 %v553, %v565
        %v570 = vadd.f32 %v554, %v566
        %v571 = vadd.f32 %v555, %v567
        %v572 = vadd.f32 %v556, %v568
        %v573 = vadd.f32 %v525, %v569
        %v574 = vadd.f32 %v526, %v570
        %v575 = vadd.f32 %v527, %v571
        %v576 = vadd.f32 %v528, %v572
        %577 = vrot.lane.b32.xlu0 %v387, 112
        %v578 = vpop.permute.xlu0 %577
        %579 = vrot.lane.b32.xlu0 %v389, 112
        %v580 = vpop.permute.xlu0 %579
        %581 = vrot.lane.b32.xlu0 %v388, 112
        %v582 = vpop.permute.xlu0 %581
        %583 = vrot.lane.b32.xlu0 %v390, 112
        %v584 = vpop.permute.xlu0 %583
        %vm585 = vcmp.lt.s32.totalorder %v362, 112
        %v586 = vsel %vm585, %v578, %v582
        %v587 = vsel %vm585, %v580, %v584
        %v588 = vsel %vm585, %v582, %v578
        %v589 = vsel %vm585, %v584, %v580
        %590 = vset.pattern.permute.xlu0 10
        %591 = vperm.xlu0 %590, %v242
        %v592 = vpop.permute.xlu0 %591
        %594 = vset.pattern.permute.xlu0 10
        %595 = vperm.xlu0 %594, %v243
        %v596 = vpop.permute.xlu0 %595
        %v598 = vmul.f32 %v592, %v586
        %v599 = vmul.f32 %v592, %v588
        %v600 = vmul.f32 %v596, %v587
        %v601 = vmul.f32 %v596, %v589
        %602 = vrot.lane.b32.xlu0 %v349, 112
        %v603 = vpop.permute.xlu0 %602
        %604 = vrot.lane.b32.xlu0 %v351, 112
        %v605 = vpop.permute.xlu0 %604
        %606 = vrot.lane.b32.xlu0 %v350, 112
        %v607 = vpop.permute.xlu0 %606
        %608 = vrot.lane.b32.xlu0 %v352, 112
        %v609 = vpop.permute.xlu0 %608
        %v610 = vsel %vm585, %v603, %v607
        %v611 = vsel %vm585, %v605, %v609
        %v612 = vsel %vm585, %v607, %v603
        %v613 = vsel %vm585, %v609, %v605
        %614 = vset.pattern.permute.xlu0 11
        %615 = vperm.xlu0 %614, %v242
        %v616 = vpop.permute.xlu0 %615
        %618 = vset.pattern.permute.xlu0 11
        %619 = vperm.xlu0 %618, %v243
        %v620 = vpop.permute.xlu0 %619
        %v622 = vmul.f32 %v616, %v610
        %v623 = vmul.f32 %v616, %v612
        %v624 = vmul.f32 %v620, %v611
        %v625 = vmul.f32 %v620, %v613
        %v626 = vadd.f32 %v598, %v622
        %v627 = vadd.f32 %v599, %v623
        %v628 = vadd.f32 %v600, %v624
        %v629 = vadd.f32 %v601, %v625
        %630 = vrot.lane.b32.xlu0 %v422, 112
        %v631 = vpop.permute.xlu0 %630
        %632 = vrot.lane.b32.xlu0 %v424, 112
        %v633 = vpop.permute.xlu0 %632
        %634 = vrot.lane.b32.xlu0 %v423, 112
        %v635 = vpop.permute.xlu0 %634
        %636 = vrot.lane.b32.xlu0 %v425, 112
        %v637 = vpop.permute.xlu0 %636
        %v638 = vsel %vm585, %v631, %v635
        %v639 = vsel %vm585, %v633, %v637
        %v640 = vsel %vm585, %v635, %v631
        %v641 = vsel %vm585, %v637, %v633
        %642 = vset.pattern.permute.xlu0 12
        %643 = vperm.xlu0 %642, %v242
        %v644 = vpop.permute.xlu0 %643
        %646 = vset.pattern.permute.xlu0 12
        %647 = vperm.xlu0 %646, %v243
        %v648 = vpop.permute.xlu0 %647
        %v650 = vmul.f32 %v644, %v638
        %v651 = vmul.f32 %v644, %v640
        %v652 = vmul.f32 %v648, %v639
        %v653 = vmul.f32 %v648, %v641
        %v654 = vadd.f32 %v626, %v650
        %v655 = vadd.f32 %v627, %v651
        %v656 = vadd.f32 %v628, %v652
        %v657 = vadd.f32 %v629, %v653
        %v658 = vlaneseq
        %v659 = vshrl.u32 %v658, 7
        %v660 = vsub.s32 3, %v659
        %v661 = vrot.slane %v245, %v660
        %v662 = vlaneseq
        %v663 = vshrl.u32 %v662, 7
        %v664 = vsub.s32 7, %v663
        %v665 = vrot.slane %v245, %v664
        %v668 = vlaneseq
        %v669 = vshrl.u32 %v668, 7
        %v670 = vsub.s32 3, %v669
        %v671 = vrot.slane %v661, %v670
        %v672 = vlaneseq
        %v673 = vshrl.u32 %v672, 7
        %v674 = vsub.s32 3, %v673
        %v675 = vrot.slane %v665, %v674
        %v676 = vmul.f32 %v654, %v671
        %v677 = vmul.f32 %v655, %v675
        %v678 = vmul.f32 %v656, %v671
        %v679 = vmul.f32 %v657, %v675
        %v680 = vadd.f32 %v573, %v676
        %v681 = vadd.f32 %v574, %v677
        %v682 = vadd.f32 %v575, %v678
        %v683 = vadd.f32 %v576, %v679
        %684 = vset.pattern.permute.xlu0 14
        %685 = vperm.xlu0 %684, %v242
        %v686 = vpop.permute.xlu0 %685
        %688 = vset.pattern.permute.xlu0 14
        %689 = vperm.xlu0 %688, %v243
        %v690 = vpop.permute.xlu0 %689
        %v692 = vadd.f32 %v680, %v686
        %v693 = vadd.f32 %v681, %v686
        %v694 = vadd.f32 %v682, %v690
        %v695 = vadd.f32 %v683, %v690
        %v696 = vmax.f32 %v692, 0.0
        %v697 = vmax.f32 %v693, 0.0
        %v698 = vmax.f32 %v694, 0.0
        %v699 = vmax.f32 %v695, 0.0
        %v700 = vmin.f32 %v696, 6.0
        %v701 = vmin.f32 %v697, 6.0
        %v702 = vmin.f32 %v698, 6.0
        %v703 = vmin.f32 %v699, 6.0
        %705 = vset.pattern.permute.xlu0 16
        %706 = vperm.xlu0 %705, %v244
        %v707 = vpop.permute.xlu0 %706
        %vm709 = vcmask 130048
        %v710 = vsel %vm709, %v244, 0
        %712 = vmatprep.subr.mxu0 %v701
        %713 = vmatpush1.msra.mxu0 %v700
        %714 = vmatprep.subr.mxu0 %v703
        %715 = vmatpush1.msra.mxu0 %v702
        %716 = vmatprep.subr.mxu0 0.0
        %717 = vmatpush1.msra.mxu0 0.0
        %718 = vmatprep.subr.mxu0 0.0
        %719 = vmatpush1.msra.mxu0 0.0
        %720 = vmatprep.subr.mxu0 0.0
        %721 = vmatpush1.msra.mxu0 0.0
        %722 = vmatprep.subr.mxu0 0.0
        %723 = vmatpush1.msra.mxu0 0.0
        %724 = vmatprep.subr.mxu0 0.0
        %725 = vmatpush1.msra.mxu0 0.0
        %726 = vmatprep.subr.mxu0 0.0
        %727 = vmatpush1.msra.mxu0 0.0
        %728 = vmatprep.subr.mxu0 0.0
        %729 = vmatpush1.msra.mxu0 0.0
        %730 = vmatprep.subr.mxu0 0.0
        %731 = vmatpush1.msra.mxu0 0.0
        %732 = vmatprep.subr.mxu0 0.0
        %733 = vmatpush1.msra.mxu0 0.0
        %734 = vmatprep.subr.mxu0 0.0
        %735 = vmatpush1.msra.mxu0 0.0
        %736 = vmatprep.subr.mxu0 0.0
        %737 = vmatpush1.msra.mxu0 0.0
        %738 = vmatprep.subr.mxu0 0.0
        %739 = vmatpush1.msra.mxu0 0.0
        %740 = vmatprep.subr.mxu0 0.0
        %741 = vmatpush1.msra.mxu0 0.0
        %742 = vmatprep.subr.mxu0 0.0
        %743 = vmatpush1.msra.mxu0 0.0
        %744 = vmatprep.subr.mxu0 0.0
        %745 = vmatpush1.msra.mxu0 0.0
        %746 = vmatprep.subr.mxu0 0.0
        %747 = vmatpush1.msra.mxu0 0.0
        %748 = vmatprep.subr.mxu0 0.0
        %749 = vmatpush1.msra.mxu0 0.0
        %750 = vmatprep.subr.mxu0 0.0
        %751 = vmatpush1.msra.mxu0 0.0
        %752 = vmatprep.subr.mxu0 0.0
        %753 = vmatpush1.msra.mxu0 0.0
        %754 = vmatprep.subr.mxu0 0.0
        %755 = vmatpush1.msra.mxu0 0.0
        %756 = vmatprep.subr.mxu0 0.0
        %757 = vmatpush1.msra.mxu0 0.0
        %758 = vmatprep.subr.mxu0 0.0
        %759 = vmatpush1.msra.mxu0 0.0
        %760 = vmatprep.subr.mxu0 0.0
        %761 = vmatpush1.msra.mxu0 0.0
        %762 = vmatprep.subr.mxu0 0.0
        %763 = vmatpush1.msra.mxu0 0.0
        %764 = vmatprep.subr.mxu0 0.0
        %765 = vmatpush1.msra.mxu0 0.0
        %766 = vmatprep.subr.mxu0 0.0
        %767 = vmatpush1.msra.mxu0 0.0
        %768 = vmatprep.subr.mxu0 0.0
        %769 = vmatpush1.msra.mxu0 0.0
        %770 = vmatprep.subr.mxu0 0.0
        %771 = vmatpush1.msra.mxu0 0.0
        %772 = vmatprep.subr.mxu0 0.0
        %773 = vmatpush1.msra.mxu0 0.0
        %774 = vmatprep.subr.mxu0 0.0
        %775 = vmatpush1.msra.mxu0 0.0
        %776 = vmatprep.mubr.f32.mxu0 0.0
        %777 = vmatmul.mubr.f32.gmra.mrb[0].mxu0 %v710
        %v778 = vpop.f32.mrb[0].mxu0
        %v779 = vadd.f32 %v707, %v778
        %v780 = vpop.f32.mrb[0].mxu0
        %v781 = vadd.f32 %v707, %v780
        %782 = vdwg.mxu0
        %v784 = vadd.f32 %v779, %v241
        %v785 = vadd.f32 %v781, %v257
        %v788 = vcombine.low %v784, %v785
        %790 = vst [vmem:[%s240] sm:$0xff] %v788
        %s791 = sand.u32 %s119, 1
        %s792 = scalar_lea.sflag [#allocation4], %s791
        %s793 = sand.u32 %s119, 1
        %s794 = smul.addr %s793, 8
        %s795 = scalar_lea.vmem [#allocation8], %s794
        // Predicated region
        $region49: #{tpu_custom_call.1} parent=35 // pred_check
          %p796 = pneg %p129
        $region50: #{tpu_custom_call.1} parent=35 // pred_check_branch
          %798 = sbr.rel (%p796) target = $region52
        $region51: #{tpu_custom_call.1} parent=35 // pred_region
          %s800 = ssub.s32 128, 128
          %801 = vsyncadd %s792, %s800
          %s802 = smul.addr %s22, 2
          %s803 = smul.addr %s802, 64
          %s804 = scalar_lea.hbm %s4, %s803
          %s806 = sshll.u32 %s795, 4
          %s807 = int_to_ptr.vmem [resolvable:$true] %s806
          %809 = dma.vmem_to_hbm [thread:$0]  %s807, 128, %s804, %s792
        $region52: #{tpu_custom_call.1} parent=35 // pred_fallthru
          _
      $region36: #{tpu_custom_call.1} parent=5 // pred_fallthru
        _
      %p810 = scmp.le.s32.totalorder 2, %s17
      // Predicated region
      $region53: #{tpu_custom_call.1} parent=5 // pred_check
        %p811 = pneg %p810
      $region54: #{tpu_custom_call.1} parent=5 // pred_check_branch
        %813 = sbr.rel (%p811) target = $region56
      $region55: #{tpu_custom_call.1} parent=5 // pred_region
        %s814 = ssub.s32 %s17, 2
        // Predicated region
        $region57: #{tpu_custom_call.1} parent=55 // pred_check
          %p815 = pneg %p135
        $region58: #{tpu_custom_call.1} parent=55 // pred_check_branch
          %817 = sbr.rel (%p815) target = $region60
        $region59: #{tpu_custom_call.1} parent=55 // pred_region
          %s818 = sand.u32 %s120, 1
          %s819 = scalar_lea.sflag [#allocation4], %s818
          %s820 = sand.u32 %s120, 1
          %s821 = smul.addr %s820, 8
          %s822 = scalar_lea.vmem [#allocation8], %s821
          %823 = dma.done %s819, 128
        $region60: #{tpu_custom_call.1} parent=55 // pred_fallthru
          _
      $region56: #{tpu_custom_call.1} parent=5 // pred_fallthru
        _
    $region6: #{tpu_custom_call.1} parent=1 // loop_footer
      %s21 = sadd.s32 1, %s17
    $region7: #{tpu_custom_call.1} parent=1 // loop_footer_branch
      %16 = sbr.rel target = $region3
    $region8: #{tpu_custom_call.1} parent=1 // loop_exit
      _
    %824 = vsyncpa [#allocation3], 1
    %s825 = scalar_lea.sflag [#allocation3], 1
    %826 = vsyncpa %s825, 1
    %827 = vsyncpa [#allocation6], 1
    %828 = vsyncpa [#allocation4], 1
    %s829 = scalar_lea.sflag [#allocation4], 1
    %830 = vsyncpa %s829, 1

</llo_original>
